<compile_context>
chip_gen: v7x
topology: tpu7x:2x2x1
jax: 0.10.0
libtpu: 0.0.40
codegen_flags: <defaults>
</compile_context>

<pallas_src>
import functools
import math

import jax
import jax.numpy as jnp
from jax import lax
from jax.experimental import pallas as pl
from jax.experimental.pallas import tpu as pltpu


def _round_up(n, m):
    return (n + m - 1) // m * m


def _chip_profile():
    """Per-generation tiling / VMEM budgets (perf hints only; safe defaults)."""
    kind = ""
    try:
        kind = jax.devices()[0].device_kind.lower()
    except Exception:
        pass
    if "v7" in kind:
        # 64 MiB VMEM per TC, 2 TCs/chip, bf16 VPU/EUP.
        return dict(vmem_cap=52 * 2**20, tile_budget=int(1.5 * 2**20),
                    min_grid=2, bf16_math=True)
    if "v5 lite" in kind or "v5e" in kind or "v5lite" in kind:
        # 128 MiB VMEM, 1 TC, no bf16 VPU/EUP.
        return dict(vmem_cap=96 * 2**20, tile_budget=4 * 2**20,
                    min_grid=1, bf16_math=False)
    # v6e and other 128-MiB parts.
    return dict(vmem_cap=96 * 2**20, tile_budget=4 * 2**20,
                min_grid=1, bf16_math=True)


def _apply_act(y, name, approx_recip):
    """Activation (in y's dtype). Every branch maps 0 -> 0, so padded lanes stay 0."""
    if name == "mish":
        # mish(y) = y * tanh(softplus(y)) = y * (1 - 2 / ((1 + e^y)^2 + 1))
        # Single EUP exp; clamp avoids overflow (for y > 20 the correction < 1e-17).
        e = jnp.exp(jnp.minimum(y, 20.0))
        t = e + 1.0
        denom = t * t + 1.0
        if approx_recip:
            corr = (2.0 * pl.reciprocal(denom.astype(jnp.float32),
                                        approx=True)).astype(y.dtype)
        else:
            corr = 2.0 / denom
        return y * (1.0 - corr)
    if name == "relu":   # torch branch uses leaky_relu(negative_slope=0.1)
        return jnp.where(y >= 0.0, y, 0.1 * y)
    if name == "tanh":
        return jnp.tanh(y)
    if name == "swish":
        if approx_recip:
            sig = pl.reciprocal(1.0 + jnp.exp(-y.astype(jnp.float32)),
                                approx=True).astype(y.dtype)
        else:
            sig = 1.0 / (1.0 + jnp.exp(-y))
        return y * sig
    return y             # torch 'else' branch: identity


def _ffn_resident_kernel(x_ref, w_ref, b_ref, o_ref, *,
                         num_layers, output_act, compute_dtype, approx_recip):
    """All L layers on one [TM, H] activation tile; weights stay VMEM-resident."""
    h = x_ref[...]
    in_dtype = h.dtype
    for layer in range(num_layers):               # static unroll; L is small
        y = lax.dot_general(                      # [TM,K] @ [K,N]; K on RHS sublane dim
            h, w_ref[layer],
            dimension_numbers=(((1,), (0,)), ((), ())),
            preferred_element_type=jnp.float32,
        ) + b_ref[layer]                          # f32 bias add
        act = "mish" if layer < num_layers - 1 else output_act
        h = _apply_act(y.astype(compute_dtype), act, approx_recip)
        if layer < num_layers - 1:
            h = h.astype(in_dtype)                # keep MXU operands narrow (bf16 etc.)
        # TODO(synk): dropout is identity (inference only); no in-kernel RNG masking.
    o_ref[...] = h.astype(o_ref.dtype)


def _ffn_streaming_kernel(x_ref, w_ref, b_ref, o_ref, h_ref, *,
                          num_layers, output_act, compute_dtype, approx_recip):
    """Fallback for huge L*H*H: one layer per 'arbitrary' grid step, weights
    streamed (double-buffered), activation tile kept in VMEM scratch."""
    l = pl.program_id(1)

    @pl.when(l == 0)
    def _():
        h_ref[...] = x_ref[...]

    y = lax.dot_general(
        h_ref[...], w_ref[0],
        dimension_numbers=(((1,), (0,)), ((), ())),
        preferred_element_type=jnp.float32,
    ) + b_ref[0]
    y = y.astype(compute_dtype)

    @pl.when(l < num_layers - 1)
    def _():
        h_ref[...] = _apply_act(y, "mish", approx_recip).astype(h_ref.dtype)

    @pl.when(l == num_layers - 1)
    def _():
        o_ref[...] = _apply_act(y, output_act, approx_recip).astype(o_ref.dtype)


def position_wise_feed_forward(x, weights, biases, *, output_act_fn="mish"):
    """x: [B, S, H]; weights[i]: [H, H] in torch [out, in] layout; biases[i]: [H]."""
    num_layers = len(weights)
    if num_layers == 0:
        return x
    B, S, H = x.shape
    M = B * S
    dtype = x.dtype
    itemsize = jnp.dtype(dtype).itemsize
    prof = _chip_profile()

    # Lane-dense hidden dim, sublane-aligned token dim.
    h_pad = _round_up(H, 128)
    m8 = _round_up(M, 8)

    # Byte-budgeted token tile (multiple of 8 rows).
    budget_rows = max(8, (prof["tile_budget"] // (h_pad * itemsize)) // 8 * 8)
    tm = min(m8, budget_rows)
    # v7x: guarantee >= 2 grid steps so the parallel axis can span both TCs.
    if prof["min_grid"] > 1 and m8 // tm < prof["min_grid"] and m8 > 8:
        tm = max(8, _round_up(m8 // prof["min_grid"], 8))
    m_pad = _round_up(m8, tm)

    xf = x.reshape(M, H)
    if (m_pad, h_pad) != (M, H):
        xf = jnp.zeros((m_pad, h_pad), dtype).at[:M, :H].set(xf)

    # Weights pre-transposed to [L, H_in, H_out] (one-time, in HBM); biases f32.
    w = jnp.stack(weights).astype(dtype).transpose(0, 2, 1)
    b = jnp.stack(biases).astype(jnp.float32)[:, None, :]
    if h_pad != H:
        w = jnp.zeros((num_layers, h_pad, h_pad), dtype).at[:, :H, :H].set(w)
        b = jnp.zeros((num_layers, 1, h_pad), jnp.float32).at[:, :, :H].set(b)

    # bf16 activation epilogue only where the VPU/EUP handle bf16 natively.
    compute_dtype = (jnp.bfloat16
                     if (dtype == jnp.bfloat16 and prof["bf16_math"])
                     else jnp.float32)
    approx_recip = compute_dtype == jnp.bfloat16   # keeps the f32 path exact

    # VMEM accounting: do the resident weights fit this generation's budget?
    w_resident = num_layers * (h_pad * h_pad * itemsize + 8 * h_pad * 4)
    act_bytes = 4 * tm * h_pad * itemsize          # x + out, double-buffered
    tmp_bytes = 3 * tm * h_pad * 4                 # f32 temporaries headroom
    resident_need = w_resident + act_bytes + tmp_bytes
    use_streaming = resident_need > int(0.85 * prof["vmem_cap"])

    cost = pl.CostEstimate(
        flops=2 * num_layers * m_pad * h_pad * h_pad,
        transcendentals=num_layers * m_pad * h_pad,
        bytes_accessed=(2 * m_pad * h_pad * itemsize
                        + num_layers * h_pad * h_pad * itemsize
                        + num_layers * h_pad * 4),
    )

    if not use_streaming:
        vmem_limit = int(min(max(int(1.2 * resident_need), 32 * 2**20),
                             prof["vmem_cap"]))
        kernel = functools.partial(
            _ffn_resident_kernel, num_layers=num_layers, output_act=output_act_fn,
            compute_dtype=compute_dtype, approx_recip=approx_recip)
        out = pl.pallas_call(
            kernel,
            out_shape=jax.ShapeDtypeStruct((m_pad, h_pad), dtype),
            grid_spec=pltpu.PrefetchScalarGridSpec(
                num_scalar_prefetch=0,
                grid=(m_pad // tm,),
                in_specs=[
                    pl.BlockSpec((tm, h_pad), lambda i: (i, 0)),
                    # Grid-invariant: whole array resident in VMEM, single copy.
                    pl.BlockSpec(memory_space=pltpu.MemorySpace.VMEM),
                    pl.BlockSpec(memory_space=pltpu.MemorySpace.VMEM),
                ],
                out_specs=pl.BlockSpec((tm, h_pad), lambda i: (i, 0)),
            ),
            compiler_params=pltpu.CompilerParams(
                dimension_semantics=("parallel",),
                vmem_limit_bytes=vmem_limit,
            ),
            cost_estimate=cost,
        )(xf, w, b)
    else:
        streaming_need = (2 * (h_pad * h_pad * itemsize + 8 * h_pad * 4)
                          + act_bytes + tmp_bytes + tm * h_pad * itemsize)
        vmem_limit = int(min(max(int(1.2 * streaming_need), 32 * 2**20),
                             prof["vmem_cap"]))
        kernel = functools.partial(
            _ffn_streaming_kernel, num_layers=num_layers, output_act=output_act_fn,
            compute_dtype=compute_dtype, approx_recip=approx_recip)
        out = pl.pallas_call(
            kernel,
            out_shape=jax.ShapeDtypeStruct((m_pad, h_pad), dtype),
            grid_spec=pltpu.PrefetchScalarGridSpec(
                num_scalar_prefetch=0,
                grid=(m_pad // tm, num_layers),
                in_specs=[
                    pl.BlockSpec((tm, h_pad), lambda i, l: (i, 0)),
                    pl.BlockSpec((1, h_pad, h_pad), lambda i, l: (l, 0, 0)),
                    pl.BlockSpec((1, 1, h_pad), lambda i, l: (l, 0, 0)),
                ],
                out_specs=pl.BlockSpec((tm, h_pad), lambda i, l: (i, 0)),
                scratch_shapes=[pltpu.VMEM((tm, h_pad), dtype)],
            ),
            compiler_params=pltpu.CompilerParams(
                dimension_semantics=("parallel", "arbitrary"),
                vmem_limit_bytes=vmem_limit,
            ),
            cost_estimate=cost,
        )(xf, w, b)

    return out[:M, :H].reshape(B, S, H)


def _init_params(key, hidden, num_layers):
    """Deterministic PyTorch-style Linear init: U(-1/sqrt(H), 1/sqrt(H))."""
    bound = 1.0 / math.sqrt(hidden)
    weights, biases = [], []
    for _ in range(num_layers):
        key, kw, kb = jax.random.split(key, 3)
        weights.append(jax.random.uniform(kw, (hidden, hidden), jnp.float32,
                                          -bound, bound))
        biases.append(jax.random.uniform(kb, (hidden,), jnp.float32,
                                         -bound, bound))
    return weights, biases


def _reference(x, weights, biases, output_act_fn="mish"):
    def mish(y):
        sp = jnp.maximum(y, 0.0) + jnp.log1p(jnp.exp(-jnp.abs(y)))
        return y * jnp.tanh(sp)

    acts = {
        "mish": mish,
        "relu": lambda y: jnp.where(y >= 0.0, y, 0.1 * y),
        "tanh": jnp.tanh,
        "swish": lambda y: y * jax.nn.sigmoid(y),
    }
    B, S, H = x.shape
    xf = x.reshape(B * S, H)
    hi = jax.lax.Precision.HIGHEST
    for i in range(len(weights) - 1):
        xf = mish(jnp.dot(xf, weights[i].T, precision=hi) + biases[i])
    y = jnp.dot(xf, weights[-1].T, precision=hi) + biases[-1]
    y = acts.get(output_act_fn, lambda v: v)(y)
    return y.reshape(B, S, H)


if __name__ == "__main__":
    batch, seq, hidden, num_layers = 2, 8, 32, 3
    key = jax.random.PRNGKey(0)
    kx, kp = jax.random.split(key)
    x = jax.random.normal(kx, (batch, seq, hidden), jnp.float32)
    weights, biases = _init_params(kp, hidden, num_layers)

    out = position_wise_feed_forward(x, weights, biases, output_act_fn="mish")
    out = jax.block_until_ready(out)

    ref = _reference(x, weights, biases, output_act_fn="mish")
    assert out.shape == (batch, seq, hidden)
    max_err = float(jnp.max(jnp.abs(out - ref)))
    assert jnp.allclose(out, ref, atol=5e-5, rtol=1e-5), max_err
    print("KERNEL_OK")
</pallas_src>

<mosaic_0001>
module attributes {stable_mosaic.version = 11 : i64} {
  func.func @_ffn_resident_kernel(%arg0: i32, %arg1: memref<16x128xf32, #tpu.memory_space<vmem>>, %arg2: memref<3x128x128xf32, #tpu.memory_space<vmem>>, %arg3: memref<3x1x128xf32, #tpu.memory_space<vmem>>, %arg4: memref<16x128xf32, #tpu.memory_space<vmem>>) attributes {dimension_semantics = [#tpu.dimension_semantics<parallel>], iteration_bounds = array<i64: 1>, scalar_prefetch = 0 : i64, scratch_operands = 0 : i64, tpu.core_type = #tpu.core_type<tc>, window_params = [{transform_indices = @transform_0, window_bounds = array<i64: 16, 128>}, {pipeline_mode = #tpu.pipeline_mode<synchronous>, transform_indices = @transform_1, window_bounds = array<i64: 3, 128, 128>}, {pipeline_mode = #tpu.pipeline_mode<synchronous>, transform_indices = @transform_2, window_bounds = array<i64: 3, 1, 128>}, {transform_indices = @transform_3, window_bounds = array<i64: 16, 128>}]} {
    %c0 = arith.constant 0 : index
    %c0_0 = arith.constant 0 : index
    %0 = vector.load %arg1[%c0, %c0_0] : memref<16x128xf32, #tpu.memory_space<vmem>>, vector<16x128xf32>
    %c0_1 = arith.constant 0 : index
    %c0_2 = arith.constant 0 : index
    %c0_3 = arith.constant 0 : index
    %1 = vector.load %arg2[%c0_1, %c0_2, %c0_3] : memref<3x128x128xf32, #tpu.memory_space<vmem>>, vector<1x128x128xf32>
    %2 = vector.shape_cast %1 : vector<1x128x128xf32> to vector<128x128xf32>
    %cst = arith.constant dense<0.000000e+00> : vector<16x128xf32>
    %3 = tpu.matmul %0, %2, %cst {dimension_numbers = #tpu.dot_dimension_numbers<[1], [0], [0], [1], [0, 0, 1, 1], [], []>} : vector<16x128xf32>, vector<128x128xf32>, vector<16x128xf32> -> vector<16x128xf32>
    %c0_4 = arith.constant 0 : index
    %c0_5 = arith.constant 0 : index
    %c0_6 = arith.constant 0 : index
    %4 = vector.load %arg3[%c0_4, %c0_5, %c0_6] : memref<3x1x128xf32, #tpu.memory_space<vmem>>, vector<1x1x128xf32>
    %5 = vector.shape_cast %4 : vector<1x1x128xf32> to vector<1x128xf32>
    %6 = vector.broadcast %5 : vector<1x128xf32> to vector<16x128xf32>
    %7 = arith.addf %3, %6 : vector<16x128xf32>
    %cst_7 = arith.constant 2.000000e+01 : f32
    %8 = vector.broadcast %cst_7 : f32 to vector<16x128xf32>
    %9 = arith.minimumf %7, %8 : vector<16x128xf32>
    %10 = math.exp %9 : vector<16x128xf32>
    %cst_8 = arith.constant 1.000000e+00 : f32
    %11 = vector.broadcast %cst_8 : f32 to vector<16x128xf32>
    %12 = arith.addf %10, %11 : vector<16x128xf32>
    %13 = arith.mulf %12, %12 : vector<16x128xf32>
    %cst_9 = arith.constant 1.000000e+00 : f32
    %14 = vector.broadcast %cst_9 : f32 to vector<16x128xf32>
    %15 = arith.addf %13, %14 : vector<16x128xf32>
    %cst_10 = arith.constant 2.000000e+00 : f32
    %16 = vector.broadcast %cst_10 : f32 to vector<16x128xf32>
    %17 = arith.divf %16, %15 : vector<16x128xf32>
    %cst_11 = arith.constant 1.000000e+00 : f32
    %18 = vector.broadcast %cst_11 : f32 to vector<16x128xf32>
    %19 = arith.subf %18, %17 : vector<16x128xf32>
    %20 = arith.mulf %7, %19 : vector<16x128xf32>
    %c1 = arith.constant 1 : index
    %c0_12 = arith.constant 0 : index
    %c0_13 = arith.constant 0 : index
    %21 = vector.load %arg2[%c1, %c0_12, %c0_13] : memref<3x128x128xf32, #tpu.memory_space<vmem>>, vector<1x128x128xf32>
    %22 = vector.shape_cast %21 : vector<1x128x128xf32> to vector<128x128xf32>
    %cst_14 = arith.constant dense<0.000000e+00> : vector<16x128xf32>
    %23 = tpu.matmul %20, %22, %cst_14 {dimension_numbers = #tpu.dot_dimension_numbers<[1], [0], [0], [1], [0, 0, 1, 1], [], []>} : vector<16x128xf32>, vector<128x128xf32>, vector<16x128xf32> -> vector<16x128xf32>
    %c1_15 = arith.constant 1 : index
    %c0_16 = arith.constant 0 : index
    %c0_17 = arith.constant 0 : index
    %24 = vector.load %arg3[%c1_15, %c0_16, %c0_17] : memref<3x1x128xf32, #tpu.memory_space<vmem>>, vector<1x1x128xf32>
    %25 = vector.shape_cast %24 : vector<1x1x128xf32> to vector<1x128xf32>
    %26 = vector.broadcast %25 : vector<1x128xf32> to vector<16x128xf32>
    %27 = arith.addf %23, %26 : vector<16x128xf32>
    %cst_18 = arith.constant 2.000000e+01 : f32
    %28 = vector.broadcast %cst_18 : f32 to vector<16x128xf32>
    %29 = arith.minimumf %27, %28 : vector<16x128xf32>
    %30 = math.exp %29 : vector<16x128xf32>
    %cst_19 = arith.constant 1.000000e+00 : f32
    %31 = vector.broadcast %cst_19 : f32 to vector<16x128xf32>
    %32 = arith.addf %30, %31 : vector<16x128xf32>
    %33 = arith.mulf %32, %32 : vector<16x128xf32>
    %cst_20 = arith.constant 1.000000e+00 : f32
    %34 = vector.broadcast %cst_20 : f32 to vector<16x128xf32>
    %35 = arith.addf %33, %34 : vector<16x128xf32>
    %cst_21 = arith.constant 2.000000e+00 : f32
    %36 = vector.broadcast %cst_21 : f32 to vector<16x128xf32>
    %37 = arith.divf %36, %35 : vector<16x128xf32>
    %cst_22 = arith.constant 1.000000e+00 : f32
    %38 = vector.broadcast %cst_22 : f32 to vector<16x128xf32>
    %39 = arith.subf %38, %37 : vector<16x128xf32>
    %40 = arith.mulf %27, %39 : vector<16x128xf32>
    %c2 = arith.constant 2 : index
    %c0_23 = arith.constant 0 : index
    %c0_24 = arith.constant 0 : index
    %41 = vector.load %arg2[%c2, %c0_23, %c0_24] : memref<3x128x128xf32, #tpu.memory_space<vmem>>, vector<1x128x128xf32>
    %42 = vector.shape_cast %41 : vector<1x128x128xf32> to vector<128x128xf32>
    %cst_25 = arith.constant dense<0.000000e+00> : vector<16x128xf32>
    %43 = tpu.matmul %40, %42, %cst_25 {dimension_numbers = #tpu.dot_dimension_numbers<[1], [0], [0], [1], [0, 0, 1, 1], [], []>} : vector<16x128xf32>, vector<128x128xf32>, vector<16x128xf32> -> vector<16x128xf32>
    %c2_26 = arith.constant 2 : index
    %c0_27 = arith.constant 0 : index
    %c0_28 = arith.constant 0 : index
    %44 = vector.load %arg3[%c2_26, %c0_27, %c0_28] : memref<3x1x128xf32, #tpu.memory_space<vmem>>, vector<1x1x128xf32>
    %45 = vector.shape_cast %44 : vector<1x1x128xf32> to vector<1x128xf32>
    %46 = vector.broadcast %45 : vector<1x128xf32> to vector<16x128xf32>
    %47 = arith.addf %43, %46 : vector<16x128xf32>
    %cst_29 = arith.constant 2.000000e+01 : f32
    %48 = vector.broadcast %cst_29 : f32 to vector<16x128xf32>
    %49 = arith.minimumf %47, %48 : vector<16x128xf32>
    %50 = math.exp %49 : vector<16x128xf32>
    %cst_30 = arith.constant 1.000000e+00 : f32
    %51 = vector.broadcast %cst_30 : f32 to vector<16x128xf32>
    %52 = arith.addf %50, %51 : vector<16x128xf32>
    %53 = arith.mulf %52, %52 : vector<16x128xf32>
    %cst_31 = arith.constant 1.000000e+00 : f32
    %54 = vector.broadcast %cst_31 : f32 to vector<16x128xf32>
    %55 = arith.addf %53, %54 : vector<16x128xf32>
    %cst_32 = arith.constant 2.000000e+00 : f32
    %56 = vector.broadcast %cst_32 : f32 to vector<16x128xf32>
    %57 = arith.divf %56, %55 : vector<16x128xf32>
    %cst_33 = arith.constant 1.000000e+00 : f32
    %58 = vector.broadcast %cst_33 : f32 to vector<16x128xf32>
    %59 = arith.subf %58, %57 : vector<16x128xf32>
    %60 = arith.mulf %47, %59 : vector<16x128xf32>
    %c0_34 = arith.constant 0 : index
    %c0_35 = arith.constant 0 : index
    %61 = vector.load %arg4[%c0_34, %c0_35] : memref<16x128xf32, #tpu.memory_space<vmem>>, vector<16x128xf32>
    tpu.vector_store %arg4[%c0_34, %c0_35], %60 {strides = array<i32>} : memref<16x128xf32, #tpu.memory_space<vmem>>, vector<16x128xf32>,
    return
  }
  func.func @transform_0(%arg0: i32) -> (i32, i32) {
    %c0_i32 = arith.constant 0 : i32
    %c0_i32_0 = arith.constant 0 : i32
    return %arg0, %c0_i32 : i32, i32
  }
  func.func @transform_1(%arg0: i32) -> (i32, i32, i32) {
    %c0_i32 = arith.constant 0 : i32
    %c0_i32_0 = arith.constant 0 : i32
    %c0_i32_1 = arith.constant 0 : i32
    %c0_i32_2 = arith.constant 0 : i32
    return %c0_i32, %c0_i32_0, %c0_i32_1 : i32, i32, i32
  }
  func.func @transform_2(%arg0: i32) -> (i32, i32, i32) {
    %c0_i32 = arith.constant 0 : i32
    %c0_i32_0 = arith.constant 0 : i32
    %c0_i32_1 = arith.constant 0 : i32
    %c0_i32_2 = arith.constant 0 : i32
    return %c0_i32, %c0_i32_0, %c0_i32_1 : i32, i32, i32
  }
  func.func @transform_3(%arg0: i32) -> (i32, i32) {
    %c0_i32 = arith.constant 0 : i32
    %c0_i32_0 = arith.constant 0 : i32
    return %arg0, %c0_i32 : i32, i32
  }
}

</mosaic_0001>

<llo_original>
// kernel: tpu_custom_call.1
$region0: #{tpu_custom_call.1}
  #allocation0 [shape = 'u32[]', space=smem, size = 0x4, offset = 0x4, fixed_abs, tag = 'smem constant byte address 0x4 - core index']
  #allocation1 [shape = 'u32[144,128]{1,0:T(1,128)}', space=vmem, size = 0x12000, scoped, tag = 'internal scratch']
  %s0 = inlined_call_operand.hbm [shape: f32[16,128], index: 0, kind: input, shape index: {}]
  %s1 = inlined_call_operand.hbm [shape: f32[3,128,128], index: 1, kind: input, shape index: {}]
  %s2 = inlined_call_operand.vmem [shape: f32[3,1,128], index: 2, kind: input, shape index: {}]
  %s3 = inlined_call_operand.hbm [shape: f32[16,128], index: 3, kind: output, shape index: {}]
  %s4 = sld [smem:[#allocation0]]
  $region30: #{tpu_custom_call.1} parent=0
    _
  %s6 = ssub.s32 1, %s4
  %s7 = scalar_select 0, %s6, %s4
  $region1: #{tpu_custom_call.1} parent=0
    #allocation2 [shape = 'u8[8192]{0}', space=vmem, size = 0x2000, scoped, tag = 'input window, operand 0, single buffered']
    #allocation3 [shape = 's32[1]{0}', space=sflag, size = 0x4, scoped, tag = 'scoped memory for tpu_custom_call.1']
    #allocation4 [shape = 's32[1]{0}', space=sflag, size = 0x4, scoped, tag = 'scoped memory for tpu_custom_call.1']
    #allocation5 [shape = 'u8[196608]{0}', space=vmem, size = 0x30000, scoped, tag = 'input window, operand 1, single buffered']
    #allocation6 [shape = 's32[1]{0}', space=sflag, size = 0x4, scoped, tag = 'scoped memory for tpu_custom_call.1']
    #allocation7 [shape = 'u8[8192]{0}', space=vmem, size = 0x2000, scoped, tag = 'output window, operand 0, single buffered']
    %8 = vsyncpa [#allocation3], 0
    %9 = vsyncpa [#allocation6], 0
    %10 = vsyncpa [#allocation4], 0
    // Predicated region
    $region2: #{tpu_custom_call.1} parent=1 // pred_check
      _
    $region3: #{tpu_custom_call.1} parent=1 // pred_check_branch
      %12 = sbr.rel (0) target = $region5
    $region4: #{tpu_custom_call.1} parent=1 // pred_region
      %s14 = ssub.s32 256, 256
      %15 = vsyncadd [#allocation3], %s14
      %s16 = sshll.u32 [#allocation2], 4
      %s17 = int_to_ptr.vmem [resolvable:$true] %s16
      %22 = dma.hbm_to_vmem [thread:$0]  %s0, 256, %s17, [#allocation3], 128, 128, 8
    $region5: #{tpu_custom_call.1} parent=1 // pred_fallthru
      _
    // Predicated region
    $region6: #{tpu_custom_call.1} parent=1 // pred_check
      _
    $region7: #{tpu_custom_call.1} parent=1 // pred_check_branch
      %24 = sbr.rel (0) target = $region9
    $region8: #{tpu_custom_call.1} parent=1 // pred_region
      %s26 = ssub.s32 6144, 6144
      %27 = vsyncadd [#allocation6], %s26
      %s28 = sshll.u32 [#allocation5], 4
      %s29 = int_to_ptr.vmem [resolvable:$true] %s28
      %34 = dma.hbm_to_vmem [thread:$0]  %s1, 6144, %s29, [#allocation6], 128, 128, 8
    $region9: #{tpu_custom_call.1} parent=1 // pred_fallthru
      _
    // Predicated region
    $region10: #{tpu_custom_call.1} parent=1 // pred_check
      _
    $region11: #{tpu_custom_call.1} parent=1 // pred_check_branch
      %36 = sbr.rel (0) target = $region13
    $region12: #{tpu_custom_call.1} parent=1 // pred_region
      _
    $region13: #{tpu_custom_call.1} parent=1 // pred_fallthru
      _
    // Predicated region
    $region14: #{tpu_custom_call.1} parent=1 // pred_check
      _
    $region15: #{tpu_custom_call.1} parent=1 // pred_check_branch
      %38 = sbr.rel (0) target = $region17
    $region16: #{tpu_custom_call.1} parent=1 // pred_region
      %39 = dma.done [#allocation3], 256
    $region17: #{tpu_custom_call.1} parent=1 // pred_fallthru
      _
    // Predicated region
    $region18: #{tpu_custom_call.1} parent=1 // pred_check
      _
    $region19: #{tpu_custom_call.1} parent=1 // pred_check_branch
      %41 = sbr.rel (0) target = $region21
    $region20: #{tpu_custom_call.1} parent=1 // pred_region
      %42 = dma.done [#allocation6], 6144
    $region21: #{tpu_custom_call.1} parent=1 // pred_fallthru
      _
    %v43 = vld [vmem:[#allocation2] sm:$0xff]
    %v44 = vld [vmem:[#allocation2 + $0x8] sm:$0xff]
    %v45 = vld [vmem:[#allocation5] sm:$0xff]
    %v46 = vld [vmem:[#allocation5 + $0x8] sm:$0xff]
    %v47 = vld [vmem:[#allocation5 + $0x10] sm:$0xff]
    %v48 = vld [vmem:[#allocation5 + $0x18] sm:$0xff]
    %v49 = vld [vmem:[#allocation5 + $0x20] sm:$0xff]
    %v50 = vld [vmem:[#allocation5 + $0x28] sm:$0xff]
    %v51 = vld [vmem:[#allocation5 + $0x30] sm:$0xff]
    %v52 = vld [vmem:[#allocation5 + $0x38] sm:$0xff]
    %v53 = vld [vmem:[#allocation5 + $0x40] sm:$0xff]
    %v54 = vld [vmem:[#allocation5 + $0x48] sm:$0xff]
    %v55 = vld [vmem:[#allocation5 + $0x50] sm:$0xff]
    %v56 = vld [vmem:[#allocation5 + $0x58] sm:$0xff]
    %v57 = vld [vmem:[#allocation5 + $0x60] sm:$0xff]
    %v58 = vld [vmem:[#allocation5 + $0x68] sm:$0xff]
    %v59 = vld [vmem:[#allocation5 + $0x70] sm:$0xff]
    %v60 = vld [vmem:[#allocation5 + $0x78] sm:$0xff]
    %v61 = vld [vmem:[%s2] sm:$0x1]
    %v63 = vlaneseq
    %v64 = vshrl.u32 %v63, 7
    %v65 = vsub.s32 0, %v64
    %v66 = vrot.slane %v61, %v65
    %68 = vmatprep.subr.mxu0 0.0
    %69 = vmatpush1.msra.mxu0 %v45
    %70 = vmatprep.subr.mxu0 0.0
    %71 = vmatpush1.msra.mxu0 %v46
    %72 = vmatprep.subr.mxu0 0.0
    %73 = vmatpush1.msra.mxu0 %v47
    %74 = vmatprep.subr.mxu0 0.0
    %75 = vmatpush1.msra.mxu0 %v48
    %76 = vmatprep.subr.mxu0 0.0
    %77 = vmatpush1.msra.mxu0 %v49
    %78 = vmatprep.subr.mxu0 0.0
    %79 = vmatpush1.msra.mxu0 %v50
    %80 = vmatprep.subr.mxu0 0.0
    %81 = vmatpush1.msra.mxu0 %v51
    %82 = vmatprep.subr.mxu0 0.0
    %83 = vmatpush1.msra.mxu0 %v52
    %84 = vmatprep.subr.mxu0 0.0
    %85 = vmatpush1.msra.mxu0 %v53
    %86 = vmatprep.subr.mxu0 0.0
    %87 = vmatpush1.msra.mxu0 %v54
    %88 = vmatprep.subr.mxu0 0.0
    %89 = vmatpush1.msra.mxu0 %v55
    %90 = vmatprep.subr.mxu0 0.0
    %91 = vmatpush1.msra.mxu0 %v56
    %92 = vmatprep.subr.mxu0 0.0
    %93 = vmatpush1.msra.mxu0 %v57
    %94 = vmatprep.subr.mxu0 0.0
    %95 = vmatpush1.msra.mxu0 %v58
    %96 = vmatprep.subr.mxu0 0.0
    %97 = vmatpush1.msra.mxu0 %v59
    %98 = vmatprep.subr.mxu0 0.0
    %99 = vmatpush1.msra.mxu0 %v60
    %100 = vmatprep.subr.mxu0 0.0
    %101 = vmatpush1.msra.mxu0 0.0
    %102 = vmatprep.subr.mxu0 0.0
    %103 = vmatpush1.msra.mxu0 0.0
    %104 = vmatprep.subr.mxu0 0.0
    %105 = vmatpush1.msra.mxu0 0.0
    %106 = vmatprep.subr.mxu0 0.0
    %107 = vmatpush1.msra.mxu0 0.0
    %108 = vmatprep.subr.mxu0 0.0
    %109 = vmatpush1.msra.mxu0 0.0
    %110 = vmatprep.subr.mxu0 0.0
    %111 = vmatpush1.msra.mxu0 0.0
    %112 = vmatprep.subr.mxu0 0.0
    %113 = vmatpush1.msra.mxu0 0.0
    %114 = vmatprep.subr.mxu0 0.0
    %115 = vmatpush1.msra.mxu0 0.0
    %116 = vmatprep.subr.mxu0 0.0
    %117 = vmatpush1.msra.mxu0 0.0
    %118 = vmatprep.subr.mxu0 0.0
    %119 = vmatpush1.msra.mxu0 0.0
    %120 = vmatprep.subr.mxu0 0.0
    %121 = vmatpush1.msra.mxu0 0.0
    %122 = vmatprep.subr.mxu0 0.0
    %123 = vmatpush1.msra.mxu0 0.0
    %124 = vmatprep.subr.mxu0 0.0
    %125 = vmatpush1.msra.mxu0 0.0
    %126 = vmatprep.subr.mxu0 0.0
    %127 = vmatpush1.msra.mxu0 0.0
    %128 = vmatprep.subr.mxu0 0.0
    %129 = vmatpush1.msra.mxu0 0.0
    %130 = vmatprep.subr.mxu0 0.0
    %131 = vmatpush1.msra.mxu0 0.0
    %132 = vmatprep.mubr.f32.mxu0 0.0
    %133 = vmatmul.mubr.f32.gmra.mrb[0].mxu0 %v43
    %v134 = vpop.f32.mrb[0].mxu0
    %v135 = vadd.f32 %v66, %v134
    %v136 = vpop.f32.mrb[0].mxu0
    %137 = vmatprep.mubr.f32.mxu0 0.0
    %138 = vmatmul.mubr.f32.gmra.mrb[0].mxu0 %v44
    %v139 = vpop.f32.mrb[0].mxu0
    %v140 = vadd.f32 %v66, %v139
    %v141 = vpop.f32.mrb[0].mxu0
    %142 = vdwg.mxu0
    %v143 = vmin.f32 %v135, 20.0
    %v144 = vmin.f32 %v140, 20.0
    %v145 = vmul.f32 %v143, 1.442695
    %v146 = vpow.pop %v145
    %v147 = vmul.f32 %v144, 1.442695
    %v148 = vpow.pop %v147
    %v149 = vadd.f32 %v146, 1.0
    %v150 = vadd.f32 %v148, 1.0
    %v151 = vmul.f32 %v149, %v149
    %v152 = vmul.f32 %v150, %v150
    %v153 = vadd.f32 %v151, 1.0
    %v154 = vadd.f32 %v152, 1.0
    %v155 = vrcp.pop %v153
    %v156 = vmul.f32 2.0, %v155
    %v157 = vrcp.pop %v154
    %v158 = vmul.f32 2.0, %v157
    %v159 = vsub.f32 1.0, %v156
    %v160 = vsub.f32 1.0, %v158
    %v161 = vmul.f32 %v135, %v159
    %v162 = vmul.f32 %v140, %v160
    %s163 = scalar_lea.vmem [#allocation5], 128
    %v164 = vld [vmem:[%s163] sm:$0xff]
    %v165 = vld [vmem:[%s163 + $0x8] sm:$0xff]
    %v166 = vld [vmem:[%s163 + $0x10] sm:$0xff]
    %v167 = vld [vmem:[%s163 + $0x18] sm:$0xff]
    %v168 = vld [vmem:[%s163 + $0x20] sm:$0xff]
    %v169 = vld [vmem:[%s163 + $0x28] sm:$0xff]
    %v170 = vld [vmem:[%s163 + $0x30] sm:$0xff]
    %v171 = vld [vmem:[%s163 + $0x38] sm:$0xff]
    %v172 = vld [vmem:[%s163 + $0x40] sm:$0xff]
    %v173 = vld [vmem:[%s163 + $0x48] sm:$0xff]
    %v174 = vld [vmem:[%s163 + $0x50] sm:$0xff]
    %v175 = vld [vmem:[%s163 + $0x58] sm:$0xff]
    %v176 = vld [vmem:[%s163 + $0x60] sm:$0xff]
    %v177 = vld [vmem:[%s163 + $0x68] sm:$0xff]
    %v178 = vld [vmem:[%s163 + $0x70] sm:$0xff]
    %v179 = vld [vmem:[%s163 + $0x78] sm:$0xff]
    %s180 = scalar_lea.vmem %s2, 1
    %v181 = vld [vmem:[%s180] sm:$0x1]
    %v183 = vlaneseq
    %v184 = vshrl.u32 %v183, 7
    %v185 = vsub.s32 0, %v184
    %v186 = vrot.slane %v181, %v185
    %188 = vmatprep.subr.mxu0 0.0
    %189 = vmatpush1.msra.mxu0 %v164
    %190 = vmatprep.subr.mxu0 0.0
    %191 = vmatpush1.msra.mxu0 %v165
    %192 = vmatprep.subr.mxu0 0.0
    %193 = vmatpush1.msra.mxu0 %v166
    %194 = vmatprep.subr.mxu0 0.0
    %195 = vmatpush1.msra.mxu0 %v167
    %196 = vmatprep.subr.mxu0 0.0
    %197 = vmatpush1.msra.mxu0 %v168
    %198 = vmatprep.subr.mxu0 0.0
    %199 = vmatpush1.msra.mxu0 %v169
    %200 = vmatprep.subr.mxu0 0.0
    %201 = vmatpush1.msra.mxu0 %v170
    %202 = vmatprep.subr.mxu0 0.0
    %203 = vmatpush1.msra.mxu0 %v171
    %204 = vmatprep.subr.mxu0 0.0
    %205 = vmatpush1.msra.mxu0 %v172
    %206 = vmatprep.subr.mxu0 0.0
    %207 = vmatpush1.msra.mxu0 %v173
    %208 = vmatprep.subr.mxu0 0.0
    %209 = vmatpush1.msra.mxu0 %v174
    %210 = vmatprep.subr.mxu0 0.0
    %211 = vmatpush1.msra.mxu0 %v175
    %212 = vmatprep.subr.mxu0 0.0
    %213 = vmatpush1.msra.mxu0 %v176
    %214 = vmatprep.subr.mxu0 0.0
    %215 = vmatpush1.msra.mxu0 %v177
    %216 = vmatprep.subr.mxu0 0.0
    %217 = vmatpush1.msra.mxu0 %v178
    %218 = vmatprep.subr.mxu0 0.0
    %219 = vmatpush1.msra.mxu0 %v179
    %220 = vmatprep.subr.mxu0 0.0
    %221 = vmatpush1.msra.mxu0 0.0
    %222 = vmatprep.subr.mxu0 0.0
    %223 = vmatpush1.msra.mxu0 0.0
    %224 = vmatprep.subr.mxu0 0.0
    %225 = vmatpush1.msra.mxu0 0.0
    %226 = vmatprep.subr.mxu0 0.0
    %227 = vmatpush1.msra.mxu0 0.0
    %228 = vmatprep.subr.mxu0 0.0
    %229 = vmatpush1.msra.mxu0 0.0
    %230 = vmatprep.subr.mxu0 0.0
    %231 = vmatpush1.msra.mxu0 0.0
    %232 = vmatprep.subr.mxu0 0.0
    %233 = vmatpush1.msra.mxu0 0.0
    %234 = vmatprep.subr.mxu0 0.0
    %235 = vmatpush1.msra.mxu0 0.0
    %236 = vmatprep.subr.mxu0 0.0
    %237 = vmatpush1.msra.mxu0 0.0
    %238 = vmatprep.subr.mxu0 0.0
    %239 = vmatpush1.msra.mxu0 0.0
    %240 = vmatprep.subr.mxu0 0.0
    %241 = vmatpush1.msra.mxu0 0.0
    %242 = vmatprep.subr.mxu0 0.0
    %243 = vmatpush1.msra.mxu0 0.0
    %244 = vmatprep.subr.mxu0 0.0
    %245 = vmatpush1.msra.mxu0 0.0
    %246 = vmatprep.subr.mxu0 0.0
    %247 = vmatpush1.msra.mxu0 0.0
    %248 = vmatprep.subr.mxu0 0.0
    %249 = vmatpush1.msra.mxu0 0.0
    %250 = vmatprep.subr.mxu0 0.0
    %251 = vmatpush1.msra.mxu0 0.0
    %252 = vmatprep.mubr.f32.mxu0 0.0
    %253 = vmatmul.mubr.f32.gmra.mrb[0].mxu0 %v161
    %v254 = vpop.f32.mrb[0].mxu0
    %v255 = vadd.f32 %v186, %v254
    %v256 = vpop.f32.mrb[0].mxu0
    %257 = vmatprep.mubr.f32.mxu0 0.0
    %258 = vmatmul.mubr.f32.gmra.mrb[0].mxu0 %v162
    %v259 = vpop.f32.mrb[0].mxu0
    %v260 = vadd.f32 %v186, %v259
    %v261 = vpop.f32.mrb[0].mxu0
    %262 = vdwg.mxu0
    %v263 = vmin.f32 %v255, 20.0
    %v264 = vmin.f32 %v260, 20.0
    %v265 = vmul.f32 %v263, 1.442695
    %v266 = vpow.pop %v265
    %v267 = vmul.f32 %v264, 1.442695
    %v268 = vpow.pop %v267
    %v269 = vadd.f32 %v266, 1.0
    %v270 = vadd.f32 %v268, 1.0
    %v271 = vmul.f32 %v269, %v269
    %v272 = vmul.f32 %v270, %v270
    %v273 = vadd.f32 %v271, 1.0
    %v274 = vadd.f32 %v272, 1.0
    %v275 = vrcp.pop %v273
    %v276 = vmul.f32 2.0, %v275
    %v277 = vrcp.pop %v274
    %v278 = vmul.f32 2.0, %v277
    %v279 = vsub.f32 1.0, %v276
    %v280 = vsub.f32 1.0, %v278
    %v281 = vmul.f32 %v255, %v279
    %v282 = vmul.f32 %v260, %v280
    %s283 = scalar_lea.vmem [#allocation5], 256
    %v284 = vld [vmem:[%s283] sm:$0xff]
    %v285 = vld [vmem:[%s283 + $0x8] sm:$0xff]
    %v286 = vld [vmem:[%s283 + $0x10] sm:$0xff]
    %v287 = vld [vmem:[%s283 + $0x18] sm:$0xff]
    %v288 = vld [vmem:[%s283 + $0x20] sm:$0xff]
    %v289 = vld [vmem:[%s283 + $0x28] sm:$0xff]
    %v290 = vld [vmem:[%s283 + $0x30] sm:$0xff]
    %v291 = vld [vmem:[%s283 + $0x38] sm:$0xff]
    %v292 = vld [vmem:[%s283 + $0x40] sm:$0xff]
    %v293 = vld [vmem:[%s283 + $0x48] sm:$0xff]
    %v294 = vld [vmem:[%s283 + $0x50] sm:$0xff]
    %v295 = vld [vmem:[%s283 + $0x58] sm:$0xff]
    %v296 = vld [vmem:[%s283 + $0x60] sm:$0xff]
    %v297 = vld [vmem:[%s283 + $0x68] sm:$0xff]
    %v298 = vld [vmem:[%s283 + $0x70] sm:$0xff]
    %v299 = vld [vmem:[%s283 + $0x78] sm:$0xff]
    %s300 = scalar_lea.vmem %s2, 2
    %v301 = vld [vmem:[%s300] sm:$0x1]
    %v303 = vlaneseq
    %v304 = vshrl.u32 %v303, 7
    %v305 = vsub.s32 0, %v304
    %v306 = vrot.slane %v301, %v305
    %308 = vmatprep.subr.mxu0 0.0
    %309 = vmatpush1.msra.mxu0 %v284
    %310 = vmatprep.subr.mxu0 0.0
    %311 = vmatpush1.msra.mxu0 %v285
    %312 = vmatprep.subr.mxu0 0.0
    %313 = vmatpush1.msra.mxu0 %v286
    %314 = vmatprep.subr.mxu0 0.0
    %315 = vmatpush1.msra.mxu0 %v287
    %316 = vmatprep.subr.mxu0 0.0
    %317 = vmatpush1.msra.mxu0 %v288
    %318 = vmatprep.subr.mxu0 0.0
    %319 = vmatpush1.msra.mxu0 %v289
    %320 = vmatprep.subr.mxu0 0.0
    %321 = vmatpush1.msra.mxu0 %v290
    %322 = vmatprep.subr.mxu0 0.0
    %323 = vmatpush1.msra.mxu0 %v291
    %324 = vmatprep.subr.mxu0 0.0
    %325 = vmatpush1.msra.mxu0 %v292
    %326 = vmatprep.subr.mxu0 0.0
    %327 = vmatpush1.msra.mxu0 %v293
    %328 = vmatprep.subr.mxu0 0.0
    %329 = vmatpush1.msra.mxu0 %v294
    %330 = vmatprep.subr.mxu0 0.0
    %331 = vmatpush1.msra.mxu0 %v295
    %332 = vmatprep.subr.mxu0 0.0
    %333 = vmatpush1.msra.mxu0 %v296
    %334 = vmatprep.subr.mxu0 0.0
    %335 = vmatpush1.msra.mxu0 %v297
    %336 = vmatprep.subr.mxu0 0.0
    %337 = vmatpush1.msra.mxu0 %v298
    %338 = vmatprep.subr.mxu0 0.0
    %339 = vmatpush1.msra.mxu0 %v299
    %340 = vmatprep.subr.mxu0 0.0
    %341 = vmatpush1.msra.mxu0 0.0
    %342 = vmatprep.subr.mxu0 0.0
    %343 = vmatpush1.msra.mxu0 0.0
    %344 = vmatprep.subr.mxu0 0.0
    %345 = vmatpush1.msra.mxu0 0.0
    %346 = vmatprep.subr.mxu0 0.0
    %347 = vmatpush1.msra.mxu0 0.0
    %348 = vmatprep.subr.mxu0 0.0
    %349 = vmatpush1.msra.mxu0 0.0
    %350 = vmatprep.subr.mxu0 0.0
    %351 = vmatpush1.msra.mxu0 0.0
    %352 = vmatprep.subr.mxu0 0.0
    %353 = vmatpush1.msra.mxu0 0.0
    %354 = vmatprep.subr.mxu0 0.0
    %355 = vmatpush1.msra.mxu0 0.0
    %356 = vmatprep.subr.mxu0 0.0
    %357 = vmatpush1.msra.mxu0 0.0
    %358 = vmatprep.subr.mxu0 0.0
    %359 = vmatpush1.msra.mxu0 0.0
    %360 = vmatprep.subr.mxu0 0.0
    %361 = vmatpush1.msra.mxu0 0.0
    %362 = vmatprep.subr.mxu0 0.0
    %363 = vmatpush1.msra.mxu0 0.0
    %364 = vmatprep.subr.mxu0 0.0
    %365 = vmatpush1.msra.mxu0 0.0
    %366 = vmatprep.subr.mxu0 0.0
    %367 = vmatpush1.msra.mxu0 0.0
    %368 = vmatprep.subr.mxu0 0.0
    %369 = vmatpush1.msra.mxu0 0.0
    %370 = vmatprep.subr.mxu0 0.0
    %371 = vmatpush1.msra.mxu0 0.0
    %372 = vmatprep.mubr.f32.mxu0 0.0
    %373 = vmatmul.mubr.f32.gmra.mrb[0].mxu0 %v281
    %v374 = vpop.f32.mrb[0].mxu0
    %v375 = vadd.f32 %v306, %v374
    %v376 = vpop.f32.mrb[0].mxu0
    %377 = vmatprep.mubr.f32.mxu0 0.0
    %378 = vmatmul.mubr.f32.gmra.mrb[0].mxu0 %v282
    %v379 = vpop.f32.mrb[0].mxu0
    %v380 = vadd.f32 %v306, %v379
    %v381 = vpop.f32.mrb[0].mxu0
    %382 = vdwg.mxu0
    %v383 = vmin.f32 %v375, 20.0
    %v384 = vmin.f32 %v380, 20.0
    %v385 = vmul.f32 %v383, 1.442695
    %v386 = vpow.pop %v385
    %v387 = vmul.f32 %v384, 1.442695
    %v388 = vpow.pop %v387
    %v389 = vadd.f32 %v386, 1.0
    %v390 = vadd.f32 %v388, 1.0
    %v391 = vmul.f32 %v389, %v389
    %v392 = vmul.f32 %v390, %v390
    %v393 = vadd.f32 %v391, 1.0
    %v394 = vadd.f32 %v392, 1.0
    %v395 = vrcp.pop %v393
    %v396 = vmul.f32 2.0, %v395
    %v397 = vrcp.pop %v394
    %v398 = vmul.f32 2.0, %v397
    %v399 = vsub.f32 1.0, %v396
    %v400 = vsub.f32 1.0, %v398
    %v401 = vmul.f32 %v375, %v399
    %v402 = vmul.f32 %v380, %v400
    %403 = vst [vmem:[#allocation7] sm:$0xff] %v401
    %404 = vst [vmem:[#allocation7 + $0x8] sm:$0xff] %v402
    // Predicated region
    $region22: #{tpu_custom_call.1} parent=1 // pred_check
      _
    $region23: #{tpu_custom_call.1} parent=1 // pred_check_branch
      %406 = sbr.rel (0) target = $region25
    $region24: #{tpu_custom_call.1} parent=1 // pred_region
      %s408 = ssub.s32 256, 256
      %409 = vsyncadd [#allocation4], %s408
      %s410 = sshll.u32 [#allocation7], 4
      %s411 = int_to_ptr.vmem [resolvable:$true] %s410
      %416 = dma.vmem_to_hbm [thread:$0]  %s411, 256, %s3, [#allocation4], 128, 128, 8
    $region25: #{tpu_custom_call.1} parent=1 // pred_fallthru
      _
    // Predicated region
    $region26: #{tpu_custom_call.1} parent=1 // pred_check
      _
    $region27: #{tpu_custom_call.1} parent=1 // pred_check_branch
      %418 = sbr.rel (0) target = $region29
    $region28: #{tpu_custom_call.1} parent=1 // pred_region
      %419 = dma.done [#allocation4], 256
    $region29: #{tpu_custom_call.1} parent=1 // pred_fallthru
      _
    %420 = vsyncpa [#allocation3], 1
    %421 = vsyncpa [#allocation6], 1
    %422 = vsyncpa [#allocation4], 1

</llo_original>
